<compile_context>
chip_gen: v5e
topology: v5e:2x2
jax: 0.10.0
libtpu: 0.0.40
codegen_flags: <defaults>
</compile_context>

<pallas_src>
import functools

import jax
import jax.numpy as jnp
from jax.experimental import pallas as pl
from jax.experimental.pallas import tpu as pltpu

PADDING = 6
K_SIZE = 13
IM_SIZE = 32   # small stand-in for IM_SIZE = 171 in the original test

_LANE = 128
_ROW_TILE = 32


def _round_up(x, m):
    return (x + m - 1) // m * m


def _build_bands(psf2d, wp_pad, wo, wo_pad):
    """Banded column-reduction matrices B with B[di, j+dj, j] = psf[di, dj].

    Depends only on the PSF (can be hoisted out of the optimization loop).
    Returns f32 array of shape (K, wp_pad, wo_pad).
    """
    k = psf2d.shape[0]
    jp = jnp.arange(wp_pad)[:, None]      # padded-input column index j'
    jo = jnp.arange(wo_pad)[None, :]      # output column index j
    dj = jp - jo
    valid = (dj >= 0) & (dj < k) & (jo < wo)
    taps = psf2d[:, jnp.clip(dj, 0, k - 1)]        # (k, wp_pad, wo_pad)
    return jnp.where(valid[None], taps, 0.0).astype(jnp.float32)


def _conv_band_kernel(xp_ref, bands_ref, o_ref, *, row_tile, k_size):
    """One output row-block: o = sum_di xp_rows(r0 + di) @ bands[di].

    xp_ref:    (Hp_pad, Wp_pad) f32 zero-padded image (resident in VMEM).
    bands_ref: (K, Wp_pad, Wo_pad) f32 banded PSF matrices (resident in VMEM).
    o_ref:     (row_tile, Wo_pad) f32 output row block.
    """
    r0 = pl.multiple_of(pl.program_id(0) * row_tile, row_tile)
    acc = jnp.zeros(o_ref.shape, jnp.float32)
    for di in range(k_size):  # 13 unrolled MXU matmuls; acc stays a few vregs
        rows = xp_ref[pl.ds(r0 + di, row_tile), :]
        acc = acc + jnp.dot(rows, bands_ref[di],
                            preferred_element_type=jnp.float32)
    o_ref[...] = acc.astype(o_ref.dtype)


def net_forward(im_optim, psf, *, row_tile=_ROW_TILE):
    """Equivalent of Net.forward(): conv2d(im_optim, psf, stride=1, padding=6).

    im_optim: (1, 1, H, W) float32 (the learnable image parameter)
    psf:      (1, 1, K, K) float32
    returns:  (1, 1, H_out, W_out) float32 with H_out = H + 2*PADDING - K + 1
    """
    n, c, H, W = im_optim.shape
    assert n == 1 and c == 1, "Net uses a single-channel, batch-1 image"
    k = psf.shape[-1]
    assert psf.shape == (1, 1, k, k)

    Ho = H + 2 * PADDING - k + 1
    Wo = W + 2 * PADDING - k + 1
    Wp = W + 2 * PADDING

    row_tile = min(row_tile, _round_up(Ho, 8))
    Ho_pad = _round_up(Ho, row_tile)          # sublane / grid row padding
    Wo_pad = _round_up(Wo, _LANE)             # lane-dense output
    Wp_pad = _round_up(Wp, _LANE)             # lane-dense input
    Hp_pad = Ho_pad + k - 1                   # rows reachable by every block

    # One fused zero-pad: conv halo + lane/row alignment in a single pass.
    xp = jnp.pad(
        im_optim[0, 0].astype(jnp.float32),
        ((PADDING, Hp_pad - H - PADDING), (PADDING, Wp_pad - W - PADDING)),
    )

    # Banded PSF matrices (function of psf only).
    bands = _build_bands(psf[0, 0].astype(jnp.float32), Wp_pad, Wo, Wo_pad)

    grid = (Ho_pad // row_tile,)
    flops = 2 * Ho_pad * Wp_pad * Wo_pad * k
    bytes_accessed = 4 * (Hp_pad * Wp_pad + k * Wp_pad * Wo_pad
                          + Ho_pad * Wo_pad)

    out_padded = pl.pallas_call(
        functools.partial(_conv_band_kernel, row_tile=row_tile, k_size=k),
        out_shape=jax.ShapeDtypeStruct((Ho_pad, Wo_pad), jnp.float32),
        grid_spec=pl.GridSpec(
            grid=grid,
            in_specs=[
                # Whole padded image, resident across row blocks.
                pl.BlockSpec((Hp_pad, Wp_pad), lambda i: (0, 0)),
                # All 13 band matrices, resident across row blocks.
                pl.BlockSpec((k, Wp_pad, Wo_pad), lambda i: (0, 0, 0)),
            ],
            out_specs=pl.BlockSpec((row_tile, Wo_pad), lambda i: (i, 0)),
        ),
        compiler_params=pltpu.CompilerParams(
            dimension_semantics=("parallel",),   # v7x: split row blocks on 2 TCs
        ),
        cost_estimate=pl.CostEstimate(
            flops=flops, transcendentals=0, bytes_accessed=bytes_accessed),
    )(xp, bands)

    out = out_padded[:Ho, :Wo].reshape(1, 1, Ho, Wo)
    return out.astype(im_optim.dtype)


def _reference_conv(im_optim, psf):
    # Pure-JAX reference (PyTorch conv2d == cross-correlation).
    return jax.lax.conv_general_dilated(
        im_optim, psf,
        window_strides=(1, 1),
        padding=[(PADDING, PADDING), (PADDING, PADDING)],
        dimension_numbers=("NCHW", "OIHW", "NCHW"),
        precision=jax.lax.Precision.HIGHEST,
    )


if __name__ == "__main__":
    key = jax.random.PRNGKey(0)
    k_im, k_psf = jax.random.split(key)

    # Deterministic "parameters": the optimized image and a normalized PSF.
    im_start = jax.random.normal(k_im, (1, 1, IM_SIZE, IM_SIZE), jnp.float32)
    psf = jax.random.uniform(k_psf, (1, 1, K_SIZE, K_SIZE), jnp.float32)
    psf = psf / jnp.sum(psf)

    out = net_forward(im_start, psf)
    out = jax.block_until_ready(out)

    ref = _reference_conv(im_start, psf)
    assert out.shape == ref.shape == (1, 1, IM_SIZE, IM_SIZE), out.shape
    assert jnp.allclose(out, ref, rtol=1e-3, atol=1e-3), "mismatch vs reference"

    print("KERNEL_OK")
</pallas_src>

<mosaic_0001>
module attributes {stable_mosaic.version = 11 : i64} {
  func.func @_conv_band_kernel(%arg0: i32, %arg1: memref<44x128xf32, #tpu.memory_space<vmem>>, %arg2: memref<13x128x128xf32, #tpu.memory_space<vmem>>, %arg3: memref<32x128xf32, #tpu.memory_space<vmem>>) attributes {dimension_semantics = [#tpu.dimension_semantics<parallel>], iteration_bounds = array<i64: 1>, scalar_prefetch = 0 : i64, scratch_operands = 0 : i64, tpu.core_type = #tpu.core_type<tc>, window_params = [{pipeline_mode = #tpu.pipeline_mode<synchronous>, transform_indices = @transform_0, window_bounds = array<i64: 44, 128>}, {pipeline_mode = #tpu.pipeline_mode<synchronous>, transform_indices = @transform_1, window_bounds = array<i64: 13, 128, 128>}, {transform_indices = @transform_2, window_bounds = array<i64: 32, 128>}]} {
    %c32_i32 = arith.constant 32 : i32
    %0 = arith.muli %arg0, %c32_i32 : i32
    %1 = tpu.assume_multiple %0, 32 : i32
    %cst = arith.constant 0.000000e+00 : f32
    %2 = vector.broadcast %cst : f32 to vector<32x128xf32>
    %c0_i32 = arith.constant 0 : i32
    %3 = arith.addi %1, %c0_i32 : i32
    %4 = arith.index_cast %3 : i32 to index
    %c0 = arith.constant 0 : index
    %5 = vector.load %arg1[%4, %c0] : memref<44x128xf32, #tpu.memory_space<vmem>>, vector<32x128xf32>
    %c0_0 = arith.constant 0 : index
    %c0_1 = arith.constant 0 : index
    %c0_2 = arith.constant 0 : index
    %6 = vector.load %arg2[%c0_0, %c0_1, %c0_2] : memref<13x128x128xf32, #tpu.memory_space<vmem>>, vector<1x128x128xf32>
    %7 = vector.shape_cast %6 : vector<1x128x128xf32> to vector<128x128xf32>
    %cst_3 = arith.constant dense<0.000000e+00> : vector<32x128xf32>
    %8 = tpu.matmul %5, %7, %cst_3 {dimension_numbers = #tpu.dot_dimension_numbers<[1], [0], [0], [1], [0, 0, 1, 1], [], []>} : vector<32x128xf32>, vector<128x128xf32>, vector<32x128xf32> -> vector<32x128xf32>
    %9 = arith.addf %2, %8 : vector<32x128xf32>
    %c1_i32 = arith.constant 1 : i32
    %10 = arith.addi %1, %c1_i32 : i32
    %11 = arith.index_cast %10 : i32 to index
    %c0_4 = arith.constant 0 : index
    %12 = vector.load %arg1[%11, %c0_4] : memref<44x128xf32, #tpu.memory_space<vmem>>, vector<32x128xf32>
    %c1 = arith.constant 1 : index
    %c0_5 = arith.constant 0 : index
    %c0_6 = arith.constant 0 : index
    %13 = vector.load %arg2[%c1, %c0_5, %c0_6] : memref<13x128x128xf32, #tpu.memory_space<vmem>>, vector<1x128x128xf32>
    %14 = vector.shape_cast %13 : vector<1x128x128xf32> to vector<128x128xf32>
    %cst_7 = arith.constant dense<0.000000e+00> : vector<32x128xf32>
    %15 = tpu.matmul %12, %14, %cst_7 {dimension_numbers = #tpu.dot_dimension_numbers<[1], [0], [0], [1], [0, 0, 1, 1], [], []>} : vector<32x128xf32>, vector<128x128xf32>, vector<32x128xf32> -> vector<32x128xf32>
    %16 = arith.addf %9, %15 : vector<32x128xf32>
    %c2_i32 = arith.constant 2 : i32
    %17 = arith.addi %1, %c2_i32 : i32
    %18 = arith.index_cast %17 : i32 to index
    %c0_8 = arith.constant 0 : index
    %19 = vector.load %arg1[%18, %c0_8] : memref<44x128xf32, #tpu.memory_space<vmem>>, vector<32x128xf32>
    %c2 = arith.constant 2 : index
    %c0_9 = arith.constant 0 : index
    %c0_10 = arith.constant 0 : index
    %20 = vector.load %arg2[%c2, %c0_9, %c0_10] : memref<13x128x128xf32, #tpu.memory_space<vmem>>, vector<1x128x128xf32>
    %21 = vector.shape_cast %20 : vector<1x128x128xf32> to vector<128x128xf32>
    %cst_11 = arith.constant dense<0.000000e+00> : vector<32x128xf32>
    %22 = tpu.matmul %19, %21, %cst_11 {dimension_numbers = #tpu.dot_dimension_numbers<[1], [0], [0], [1], [0, 0, 1, 1], [], []>} : vector<32x128xf32>, vector<128x128xf32>, vector<32x128xf32> -> vector<32x128xf32>
    %23 = arith.addf %16, %22 : vector<32x128xf32>
    %c3_i32 = arith.constant 3 : i32
    %24 = arith.addi %1, %c3_i32 : i32
    %25 = arith.index_cast %24 : i32 to index
    %c0_12 = arith.constant 0 : index
    %26 = vector.load %arg1[%25, %c0_12] : memref<44x128xf32, #tpu.memory_space<vmem>>, vector<32x128xf32>
    %c3 = arith.constant 3 : index
    %c0_13 = arith.constant 0 : index
    %c0_14 = arith.constant 0 : index
    %27 = vector.load %arg2[%c3, %c0_13, %c0_14] : memref<13x128x128xf32, #tpu.memory_space<vmem>>, vector<1x128x128xf32>
    %28 = vector.shape_cast %27 : vector<1x128x128xf32> to vector<128x128xf32>
    %cst_15 = arith.constant dense<0.000000e+00> : vector<32x128xf32>
    %29 = tpu.matmul %26, %28, %cst_15 {dimension_numbers = #tpu.dot_dimension_numbers<[1], [0], [0], [1], [0, 0, 1, 1], [], []>} : vector<32x128xf32>, vector<128x128xf32>, vector<32x128xf32> -> vector<32x128xf32>
    %30 = arith.addf %23, %29 : vector<32x128xf32>
    %c4_i32 = arith.constant 4 : i32
    %31 = arith.addi %1, %c4_i32 : i32
    %32 = arith.index_cast %31 : i32 to index
    %c0_16 = arith.constant 0 : index
    %33 = vector.load %arg1[%32, %c0_16] : memref<44x128xf32, #tpu.memory_space<vmem>>, vector<32x128xf32>
    %c4 = arith.constant 4 : index
    %c0_17 = arith.constant 0 : index
    %c0_18 = arith.constant 0 : index
    %34 = vector.load %arg2[%c4, %c0_17, %c0_18] : memref<13x128x128xf32, #tpu.memory_space<vmem>>, vector<1x128x128xf32>
    %35 = vector.shape_cast %34 : vector<1x128x128xf32> to vector<128x128xf32>
    %cst_19 = arith.constant dense<0.000000e+00> : vector<32x128xf32>
    %36 = tpu.matmul %33, %35, %cst_19 {dimension_numbers = #tpu.dot_dimension_numbers<[1], [0], [0], [1], [0, 0, 1, 1], [], []>} : vector<32x128xf32>, vector<128x128xf32>, vector<32x128xf32> -> vector<32x128xf32>
    %37 = arith.addf %30, %36 : vector<32x128xf32>
    %c5_i32 = arith.constant 5 : i32
    %38 = arith.addi %1, %c5_i32 : i32
    %39 = arith.index_cast %38 : i32 to index
    %c0_20 = arith.constant 0 : index
    %40 = vector.load %arg1[%39, %c0_20] : memref<44x128xf32, #tpu.memory_space<vmem>>, vector<32x128xf32>
    %c5 = arith.constant 5 : index
    %c0_21 = arith.constant 0 : index
    %c0_22 = arith.constant 0 : index
    %41 = vector.load %arg2[%c5, %c0_21, %c0_22] : memref<13x128x128xf32, #tpu.memory_space<vmem>>, vector<1x128x128xf32>
    %42 = vector.shape_cast %41 : vector<1x128x128xf32> to vector<128x128xf32>
    %cst_23 = arith.constant dense<0.000000e+00> : vector<32x128xf32>
    %43 = tpu.matmul %40, %42, %cst_23 {dimension_numbers = #tpu.dot_dimension_numbers<[1], [0], [0], [1], [0, 0, 1, 1], [], []>} : vector<32x128xf32>, vector<128x128xf32>, vector<32x128xf32> -> vector<32x128xf32>
    %44 = arith.addf %37, %43 : vector<32x128xf32>
    %c6_i32 = arith.constant 6 : i32
    %45 = arith.addi %1, %c6_i32 : i32
    %46 = arith.index_cast %45 : i32 to index
    %c0_24 = arith.constant 0 : index
    %47 = vector.load %arg1[%46, %c0_24] : memref<44x128xf32, #tpu.memory_space<vmem>>, vector<32x128xf32>
    %c6 = arith.constant 6 : index
    %c0_25 = arith.constant 0 : index
    %c0_26 = arith.constant 0 : index
    %48 = vector.load %arg2[%c6, %c0_25, %c0_26] : memref<13x128x128xf32, #tpu.memory_space<vmem>>, vector<1x128x128xf32>
    %49 = vector.shape_cast %48 : vector<1x128x128xf32> to vector<128x128xf32>
    %cst_27 = arith.constant dense<0.000000e+00> : vector<32x128xf32>
    %50 = tpu.matmul %47, %49, %cst_27 {dimension_numbers = #tpu.dot_dimension_numbers<[1], [0], [0], [1], [0, 0, 1, 1], [], []>} : vector<32x128xf32>, vector<128x128xf32>, vector<32x128xf32> -> vector<32x128xf32>
    %51 = arith.addf %44, %50 : vector<32x128xf32>
    %c7_i32 = arith.constant 7 : i32
    %52 = arith.addi %1, %c7_i32 : i32
    %53 = arith.index_cast %52 : i32 to index
    %c0_28 = arith.constant 0 : index
    %54 = vector.load %arg1[%53, %c0_28] : memref<44x128xf32, #tpu.memory_space<vmem>>, vector<32x128xf32>
    %c7 = arith.constant 7 : index
    %c0_29 = arith.constant 0 : index
    %c0_30 = arith.constant 0 : index
    %55 = vector.load %arg2[%c7, %c0_29, %c0_30] : memref<13x128x128xf32, #tpu.memory_space<vmem>>, vector<1x128x128xf32>
    %56 = vector.shape_cast %55 : vector<1x128x128xf32> to vector<128x128xf32>
    %cst_31 = arith.constant dense<0.000000e+00> : vector<32x128xf32>
    %57 = tpu.matmul %54, %56, %cst_31 {dimension_numbers = #tpu.dot_dimension_numbers<[1], [0], [0], [1], [0, 0, 1, 1], [], []>} : vector<32x128xf32>, vector<128x128xf32>, vector<32x128xf32> -> vector<32x128xf32>
    %58 = arith.addf %51, %57 : vector<32x128xf32>
    %c8_i32 = arith.constant 8 : i32
    %59 = arith.addi %1, %c8_i32 : i32
    %60 = arith.index_cast %59 : i32 to index
    %c0_32 = arith.constant 0 : index
    %61 = vector.load %arg1[%60, %c0_32] : memref<44x128xf32, #tpu.memory_space<vmem>>, vector<32x128xf32>
    %c8 = arith.constant 8 : index
    %c0_33 = arith.constant 0 : index
    %c0_34 = arith.constant 0 : index
    %62 = vector.load %arg2[%c8, %c0_33, %c0_34] : memref<13x128x128xf32, #tpu.memory_space<vmem>>, vector<1x128x128xf32>
    %63 = vector.shape_cast %62 : vector<1x128x128xf32> to vector<128x128xf32>
    %cst_35 = arith.constant dense<0.000000e+00> : vector<32x128xf32>
    %64 = tpu.matmul %61, %63, %cst_35 {dimension_numbers = #tpu.dot_dimension_numbers<[1], [0], [0], [1], [0, 0, 1, 1], [], []>} : vector<32x128xf32>, vector<128x128xf32>, vector<32x128xf32> -> vector<32x128xf32>
    %65 = arith.addf %58, %64 : vector<32x128xf32>
    %c9_i32 = arith.constant 9 : i32
    %66 = arith.addi %1, %c9_i32 : i32
    %67 = arith.index_cast %66 : i32 to index
    %c0_36 = arith.constant 0 : index
    %68 = vector.load %arg1[%67, %c0_36] : memref<44x128xf32, #tpu.memory_space<vmem>>, vector<32x128xf32>
    %c9 = arith.constant 9 : index
    %c0_37 = arith.constant 0 : index
    %c0_38 = arith.constant 0 : index
    %69 = vector.load %arg2[%c9, %c0_37, %c0_38] : memref<13x128x128xf32, #tpu.memory_space<vmem>>, vector<1x128x128xf32>
    %70 = vector.shape_cast %69 : vector<1x128x128xf32> to vector<128x128xf32>
    %cst_39 = arith.constant dense<0.000000e+00> : vector<32x128xf32>
    %71 = tpu.matmul %68, %70, %cst_39 {dimension_numbers = #tpu.dot_dimension_numbers<[1], [0], [0], [1], [0, 0, 1, 1], [], []>} : vector<32x128xf32>, vector<128x128xf32>, vector<32x128xf32> -> vector<32x128xf32>
    %72 = arith.addf %65, %71 : vector<32x128xf32>
    %c10_i32 = arith.constant 10 : i32
    %73 = arith.addi %1, %c10_i32 : i32
    %74 = arith.index_cast %73 : i32 to index
    %c0_40 = arith.constant 0 : index
    %75 = vector.load %arg1[%74, %c0_40] : memref<44x128xf32, #tpu.memory_space<vmem>>, vector<32x128xf32>
    %c10 = arith.constant 10 : index
    %c0_41 = arith.constant 0 : index
    %c0_42 = arith.constant 0 : index
    %76 = vector.load %arg2[%c10, %c0_41, %c0_42] : memref<13x128x128xf32, #tpu.memory_space<vmem>>, vector<1x128x128xf32>
    %77 = vector.shape_cast %76 : vector<1x128x128xf32> to vector<128x128xf32>
    %cst_43 = arith.constant dense<0.000000e+00> : vector<32x128xf32>
    %78 = tpu.matmul %75, %77, %cst_43 {dimension_numbers = #tpu.dot_dimension_numbers<[1], [0], [0], [1], [0, 0, 1, 1], [], []>} : vector<32x128xf32>, vector<128x128xf32>, vector<32x128xf32> -> vector<32x128xf32>
    %79 = arith.addf %72, %78 : vector<32x128xf32>
    %c11_i32 = arith.constant 11 : i32
    %80 = arith.addi %1, %c11_i32 : i32
    %81 = arith.index_cast %80 : i32 to index
    %c0_44 = arith.constant 0 : index
    %82 = vector.load %arg1[%81, %c0_44] : memref<44x128xf32, #tpu.memory_space<vmem>>, vector<32x128xf32>
    %c11 = arith.constant 11 : index
    %c0_45 = arith.constant 0 : index
    %c0_46 = arith.constant 0 : index
    %83 = vector.load %arg2[%c11, %c0_45, %c0_46] : memref<13x128x128xf32, #tpu.memory_space<vmem>>, vector<1x128x128xf32>
    %84 = vector.shape_cast %83 : vector<1x128x128xf32> to vector<128x128xf32>
    %cst_47 = arith.constant dense<0.000000e+00> : vector<32x128xf32>
    %85 = tpu.matmul %82, %84, %cst_47 {dimension_numbers = #tpu.dot_dimension_numbers<[1], [0], [0], [1], [0, 0, 1, 1], [], []>} : vector<32x128xf32>, vector<128x128xf32>, vector<32x128xf32> -> vector<32x128xf32>
    %86 = arith.addf %79, %85 : vector<32x128xf32>
    %c12_i32 = arith.constant 12 : i32
    %87 = arith.addi %1, %c12_i32 : i32
    %88 = arith.index_cast %87 : i32 to index
    %c0_48 = arith.constant 0 : index
    %89 = vector.load %arg1[%88, %c0_48] : memref<44x128xf32, #tpu.memory_space<vmem>>, vector<32x128xf32>
    %c12 = arith.constant 12 : index
    %c0_49 = arith.constant 0 : index
    %c0_50 = arith.constant 0 : index
    %90 = vector.load %arg2[%c12, %c0_49, %c0_50] : memref<13x128x128xf32, #tpu.memory_space<vmem>>, vector<1x128x128xf32>
    %91 = vector.shape_cast %90 : vector<1x128x128xf32> to vector<128x128xf32>
    %cst_51 = arith.constant dense<0.000000e+00> : vector<32x128xf32>
    %92 = tpu.matmul %89, %91, %cst_51 {dimension_numbers = #tpu.dot_dimension_numbers<[1], [0], [0], [1], [0, 0, 1, 1], [], []>} : vector<32x128xf32>, vector<128x128xf32>, vector<32x128xf32> -> vector<32x128xf32>
    %93 = arith.addf %86, %92 : vector<32x128xf32>
    %c0_52 = arith.constant 0 : index
    %c0_53 = arith.constant 0 : index
    %94 = vector.load %arg3[%c0_52, %c0_53] : memref<32x128xf32, #tpu.memory_space<vmem>>, vector<32x128xf32>
    tpu.vector_store %arg3[%c0_52, %c0_53], %93 {strides = array<i32>} : memref<32x128xf32, #tpu.memory_space<vmem>>, vector<32x128xf32>,
    return
  }
  func.func @transform_0(%arg0: i32) -> (i32, i32) {
    %c0_i32 = arith.constant 0 : i32
    %c0_i32_0 = arith.constant 0 : i32
    %c0_i32_1 = arith.constant 0 : i32
    return %c0_i32, %c0_i32_0 : i32, i32
  }
  func.func @transform_1(%arg0: i32) -> (i32, i32, i32) {
    %c0_i32 = arith.constant 0 : i32
    %c0_i32_0 = arith.constant 0 : i32
    %c0_i32_1 = arith.constant 0 : i32
    %c0_i32_2 = arith.constant 0 : i32
    return %c0_i32, %c0_i32_0, %c0_i32_1 : i32, i32, i32
  }
  func.func @transform_2(%arg0: i32) -> (i32, i32) {
    %c0_i32 = arith.constant 0 : i32
    %c0_i32_0 = arith.constant 0 : i32
    return %arg0, %c0_i32 : i32, i32
  }
}

</mosaic_0001>

<llo_original>
// kernel: tpu_custom_call.1
$region0: #{tpu_custom_call.1}
  #allocation0 [shape = 'u32[]', space=smem, size = 0x4, offset = 0x4, fixed_abs, tag = 'smem constant byte address 0x4 - core index']
  #allocation1 [shape = 'u32[72,128]{1,0:T(1,128)}', space=vmem, size = 0x9000, scoped, tag = 'internal scratch']
  %s0 = inlined_call_operand.hbm [shape: f32[44,128], index: 0, kind: input, shape index: {}]
  %s1 = inlined_call_operand.hbm [shape: f32[13,128,128], index: 1, kind: input, shape index: {}]
  %s2 = inlined_call_operand.hbm [shape: f32[32,128], index: 2, kind: output, shape index: {}]
  %s3 = sld [smem:[#allocation0]]
  $region26: #{tpu_custom_call.1} parent=0
    _
  %s5 = ssub.s32 1, %s3
  %s6 = scalar_select 0, %s5, %s3
  $region1: #{tpu_custom_call.1} parent=0
    #allocation2 [shape = 'u8[24576]{0}', space=vmem, size = 0x6000, scoped, tag = 'input window, operand 0, single buffered']
    #allocation3 [shape = 's32[1]{0}', space=sflag, size = 0x4, scoped, tag = 'scoped memory for tpu_custom_call.1']
    #allocation4 [shape = 's32[1]{0}', space=sflag, size = 0x4, scoped, tag = 'scoped memory for tpu_custom_call.1']
    #allocation5 [shape = 'u8[851968]{0}', space=vmem, size = 0xd0000, scoped, tag = 'input window, operand 1, single buffered']
    #allocation6 [shape = 's32[1]{0}', space=sflag, size = 0x4, scoped, tag = 'scoped memory for tpu_custom_call.1']
    #allocation7 [shape = 'u8[16384]{0}', space=vmem, size = 0x4000, scoped, tag = 'output window, operand 0, single buffered']
    %7 = vsyncpa [#allocation3], 0
    %8 = vsyncpa [#allocation6], 0
    %9 = vsyncpa [#allocation4], 0
    // Predicated region
    $region2: #{tpu_custom_call.1} parent=1 // pred_check
      _
    $region3: #{tpu_custom_call.1} parent=1 // pred_check_branch
      %11 = sbr.rel (0) target = $region5
    $region4: #{tpu_custom_call.1} parent=1 // pred_region
      %13 = vsyncadd [#allocation3], 0
      %s14 = sshll.u32 %s0, 4
      %s15 = int_to_ptr.hbm [resolvable:$true] %s14
      %s16 = sshll.u32 [#allocation2], 4
      %s17 = int_to_ptr.vmem [resolvable:$true] %s16
      %22 = dma.hbm_to_vmem [thread:$0]  %s15, 768, %s17, [#allocation3], 128, 128, 8
    $region5: #{tpu_custom_call.1} parent=1 // pred_fallthru
      _
    // Predicated region
    $region6: #{tpu_custom_call.1} parent=1 // pred_check
      _
    $region7: #{tpu_custom_call.1} parent=1 // pred_check_branch
      %24 = sbr.rel (0) target = $region9
    $region8: #{tpu_custom_call.1} parent=1 // pred_region
      %26 = vsyncadd [#allocation6], 0
      %s27 = sshll.u32 %s1, 4
      %s28 = int_to_ptr.hbm [resolvable:$true] %s27
      %s29 = sshll.u32 [#allocation5], 4
      %s30 = int_to_ptr.vmem [resolvable:$true] %s29
      %35 = dma.hbm_to_vmem [thread:$0]  %s28, 26624, %s30, [#allocation6], 128, 128, 8
    $region9: #{tpu_custom_call.1} parent=1 // pred_fallthru
      _
    // Predicated region
    $region10: #{tpu_custom_call.1} parent=1 // pred_check
      _
    $region11: #{tpu_custom_call.1} parent=1 // pred_check_branch
      %37 = sbr.rel (0) target = $region13
    $region12: #{tpu_custom_call.1} parent=1 // pred_region
      %39 = dma.done [#allocation3], 768
    $region13: #{tpu_custom_call.1} parent=1 // pred_fallthru
      _
    // Predicated region
    $region14: #{tpu_custom_call.1} parent=1 // pred_check
      _
    $region15: #{tpu_custom_call.1} parent=1 // pred_check_branch
      %41 = sbr.rel (0) target = $region17
    $region16: #{tpu_custom_call.1} parent=1 // pred_region
      %43 = dma.done [#allocation6], 26624
    $region17: #{tpu_custom_call.1} parent=1 // pred_fallthru
      _
    %s44 = smul.u32 0, 32
    %s45 = scalar_lea.vmem [#allocation2], %s44
    %v46 = vld [vmem:[%s45] sm:$0xff]
    %v47 = vld [vmem:[%s45 + $0x8] sm:$0xff]
    %v48 = vld [vmem:[%s45 + $0x10] sm:$0xff]
    %v49 = vld [vmem:[%s45 + $0x18] sm:$0xff]
    %v50 = vld [vmem:[#allocation5] sm:$0xff]
    %v51 = vld [vmem:[#allocation5 + $0x8] sm:$0xff]
    %v52 = vld [vmem:[#allocation5 + $0x10] sm:$0xff]
    %v53 = vld [vmem:[#allocation5 + $0x18] sm:$0xff]
    %v54 = vld [vmem:[#allocation5 + $0x20] sm:$0xff]
    %v55 = vld [vmem:[#allocation5 + $0x28] sm:$0xff]
    %v56 = vld [vmem:[#allocation5 + $0x30] sm:$0xff]
    %v57 = vld [vmem:[#allocation5 + $0x38] sm:$0xff]
    %v58 = vld [vmem:[#allocation5 + $0x40] sm:$0xff]
    %v59 = vld [vmem:[#allocation5 + $0x48] sm:$0xff]
    %v60 = vld [vmem:[#allocation5 + $0x50] sm:$0xff]
    %v61 = vld [vmem:[#allocation5 + $0x58] sm:$0xff]
    %v62 = vld [vmem:[#allocation5 + $0x60] sm:$0xff]
    %v63 = vld [vmem:[#allocation5 + $0x68] sm:$0xff]
    %v64 = vld [vmem:[#allocation5 + $0x70] sm:$0xff]
    %v65 = vld [vmem:[#allocation5 + $0x78] sm:$0xff]
    %s66 = sadd.s32 %s44, 1
    %s67 = scalar_lea.vmem [#allocation2], %s66
    %v68 = vld [vmem:[%s67] sm:$0xff]
    %v69 = vld [vmem:[%s67 + $0x8] sm:$0xff]
    %v70 = vld [vmem:[%s67 + $0x10] sm:$0xff]
    %v71 = vld [vmem:[%s67 + $0x18] sm:$0xff]
    %s72 = scalar_lea.vmem [#allocation5], 128
    %v73 = vld [vmem:[%s72] sm:$0xff]
    %v74 = vld [vmem:[%s72 + $0x8] sm:$0xff]
    %v75 = vld [vmem:[%s72 + $0x10] sm:$0xff]
    %v76 = vld [vmem:[%s72 + $0x18] sm:$0xff]
    %v77 = vld [vmem:[%s72 + $0x20] sm:$0xff]
    %v78 = vld [vmem:[%s72 + $0x28] sm:$0xff]
    %v79 = vld [vmem:[%s72 + $0x30] sm:$0xff]
    %v80 = vld [vmem:[%s72 + $0x38] sm:$0xff]
    %v81 = vld [vmem:[%s72 + $0x40] sm:$0xff]
    %v82 = vld [vmem:[%s72 + $0x48] sm:$0xff]
    %v83 = vld [vmem:[%s72 + $0x50] sm:$0xff]
    %v84 = vld [vmem:[%s72 + $0x58] sm:$0xff]
    %v85 = vld [vmem:[%s72 + $0x60] sm:$0xff]
    %v86 = vld [vmem:[%s72 + $0x68] sm:$0xff]
    %v87 = vld [vmem:[%s72 + $0x70] sm:$0xff]
    %v88 = vld [vmem:[%s72 + $0x78] sm:$0xff]
    %89 = vmatpush.msra.mxu0 %v88
    %90 = vmatpush.msra.mxu0 %v87
    %91 = vmatpush.msra.mxu0 %v86
    %92 = vmatpush.msra.mxu0 %v85
    %93 = vmatpush.msra.mxu0 %v84
    %94 = vmatpush.msra.mxu0 %v83
    %95 = vmatpush.msra.mxu0 %v82
    %96 = vmatpush.msra.mxu0 %v81
    %97 = vmatpush.msra.mxu0 %v80
    %98 = vmatpush.msra.mxu0 %v79
    %99 = vmatpush.msra.mxu0 %v78
    %100 = vmatpush.msra.mxu0 %v77
    %101 = vmatpush.msra.mxu0 %v76
    %102 = vmatpush.msra.mxu0 %v75
    %103 = vmatpush.msra.mxu0 %v74
    %104 = vmatpush.msra.mxu0 %v73
    %105 = vmatmul.f32.gmra.mxu0 %v68
    %v106 = vpop.f32.mrf.mxu0
    %v107 = vadd.f32 0.0, %v106
    %108 = vmatmul.f32.gmra.mxu0 %v69
    %v109 = vpop.f32.mrf.mxu0
    %v110 = vadd.f32 0.0, %v109
    %111 = vmatmul.f32.gmra.mxu0 %v70
    %v112 = vpop.f32.mrf.mxu0
    %v113 = vadd.f32 0.0, %v112
    %114 = vmatmul.f32.gmra.mxu0 %v71
    %v115 = vpop.f32.mrf.mxu0
    %v116 = vadd.f32 0.0, %v115
    %117 = vdwg.mxu0
    %118 = vmatpush.msra.mxu0 %v65
    %119 = vmatpush.msra.mxu0 %v64
    %120 = vmatpush.msra.mxu0 %v63
    %121 = vmatpush.msra.mxu0 %v62
    %122 = vmatpush.msra.mxu0 %v61
    %123 = vmatpush.msra.mxu0 %v60
    %124 = vmatpush.msra.mxu0 %v59
    %125 = vmatpush.msra.mxu0 %v58
    %126 = vmatpush.msra.mxu0 %v57
    %127 = vmatpush.msra.mxu0 %v56
    %128 = vmatpush.msra.mxu0 %v55
    %129 = vmatpush.msra.mxu0 %v54
    %130 = vmatpush.msra.mxu0 %v53
    %131 = vmatpush.msra.mxu0 %v52
    %132 = vmatpush.msra.mxu0 %v51
    %133 = vmatpush.msra.mxu0 %v50
    %134 = vmatmul.f32.gmra.mxu0 %v46
    %v135 = vpop.f32.mrf.mxu0
    %v136 = vadd.f32 %v107, %v135
    %137 = vmatmul.f32.gmra.mxu0 %v47
    %v138 = vpop.f32.mrf.mxu0
    %v139 = vadd.f32 %v110, %v138
    %140 = vmatmul.f32.gmra.mxu0 %v48
    %v141 = vpop.f32.mrf.mxu0
    %v142 = vadd.f32 %v113, %v141
    %143 = vmatmul.f32.gmra.mxu0 %v49
    %v144 = vpop.f32.mrf.mxu0
    %v145 = vadd.f32 %v116, %v144
    %146 = vdwg.mxu0
    %s147 = sadd.s32 %s44, 2
    %s148 = scalar_lea.vmem [#allocation2], %s147
    %v149 = vld [vmem:[%s148] sm:$0xff]
    %v150 = vld [vmem:[%s148 + $0x8] sm:$0xff]
    %v151 = vld [vmem:[%s148 + $0x10] sm:$0xff]
    %v152 = vld [vmem:[%s148 + $0x18] sm:$0xff]
    %s153 = scalar_lea.vmem [#allocation5], 256
    %v154 = vld [vmem:[%s153] sm:$0xff]
    %v155 = vld [vmem:[%s153 + $0x8] sm:$0xff]
    %v156 = vld [vmem:[%s153 + $0x10] sm:$0xff]
    %v157 = vld [vmem:[%s153 + $0x18] sm:$0xff]
    %v158 = vld [vmem:[%s153 + $0x20] sm:$0xff]
    %v159 = vld [vmem:[%s153 + $0x28] sm:$0xff]
    %v160 = vld [vmem:[%s153 + $0x30] sm:$0xff]
    %v161 = vld [vmem:[%s153 + $0x38] sm:$0xff]
    %v162 = vld [vmem:[%s153 + $0x40] sm:$0xff]
    %v163 = vld [vmem:[%s153 + $0x48] sm:$0xff]
    %v164 = vld [vmem:[%s153 + $0x50] sm:$0xff]
    %v165 = vld [vmem:[%s153 + $0x58] sm:$0xff]
    %v166 = vld [vmem:[%s153 + $0x60] sm:$0xff]
    %v167 = vld [vmem:[%s153 + $0x68] sm:$0xff]
    %v168 = vld [vmem:[%s153 + $0x70] sm:$0xff]
    %v169 = vld [vmem:[%s153 + $0x78] sm:$0xff]
    %170 = vmatpush.msra.mxu0 %v169
    %171 = vmatpush.msra.mxu0 %v168
    %172 = vmatpush.msra.mxu0 %v167
    %173 = vmatpush.msra.mxu0 %v166
    %174 = vmatpush.msra.mxu0 %v165
    %175 = vmatpush.msra.mxu0 %v164
    %176 = vmatpush.msra.mxu0 %v163
    %177 = vmatpush.msra.mxu0 %v162
    %178 = vmatpush.msra.mxu0 %v161
    %179 = vmatpush.msra.mxu0 %v160
    %180 = vmatpush.msra.mxu0 %v159
    %181 = vmatpush.msra.mxu0 %v158
    %182 = vmatpush.msra.mxu0 %v157
    %183 = vmatpush.msra.mxu0 %v156
    %184 = vmatpush.msra.mxu0 %v155
    %185 = vmatpush.msra.mxu0 %v154
    %186 = vmatmul.f32.gmra.mxu0 %v149
    %v187 = vpop.f32.mrf.mxu0
    %v188 = vadd.f32 0.0, %v187
    %189 = vmatmul.f32.gmra.mxu0 %v150
    %v190 = vpop.f32.mrf.mxu0
    %v191 = vadd.f32 0.0, %v190
    %192 = vmatmul.f32.gmra.mxu0 %v151
    %v193 = vpop.f32.mrf.mxu0
    %v194 = vadd.f32 0.0, %v193
    %195 = vmatmul.f32.gmra.mxu0 %v152
    %v196 = vpop.f32.mrf.mxu0
    %v197 = vadd.f32 0.0, %v196
    %198 = vdwg.mxu0
    %v199 = vadd.f32 %v136, %v188
    %v200 = vadd.f32 %v139, %v191
    %v201 = vadd.f32 %v142, %v194
    %v202 = vadd.f32 %v145, %v197
    %s203 = sadd.s32 %s44, 3
    %s204 = scalar_lea.vmem [#allocation2], %s203
    %v205 = vld [vmem:[%s204] sm:$0xff]
    %v206 = vld [vmem:[%s204 + $0x8] sm:$0xff]
    %v207 = vld [vmem:[%s204 + $0x10] sm:$0xff]
    %v208 = vld [vmem:[%s204 + $0x18] sm:$0xff]
    %s209 = scalar_lea.vmem [#allocation5], 384
    %v210 = vld [vmem:[%s209] sm:$0xff]
    %v211 = vld [vmem:[%s209 + $0x8] sm:$0xff]
    %v212 = vld [vmem:[%s209 + $0x10] sm:$0xff]
    %v213 = vld [vmem:[%s209 + $0x18] sm:$0xff]
    %v214 = vld [vmem:[%s209 + $0x20] sm:$0xff]
    %v215 = vld [vmem:[%s209 + $0x28] sm:$0xff]
    %v216 = vld [vmem:[%s209 + $0x30] sm:$0xff]
    %v217 = vld [vmem:[%s209 + $0x38] sm:$0xff]
    %v218 = vld [vmem:[%s209 + $0x40] sm:$0xff]
    %v219 = vld [vmem:[%s209 + $0x48] sm:$0xff]
    %v220 = vld [vmem:[%s209 + $0x50] sm:$0xff]
    %v221 = vld [vmem:[%s209 + $0x58] sm:$0xff]
    %v222 = vld [vmem:[%s209 + $0x60] sm:$0xff]
    %v223 = vld [vmem:[%s209 + $0x68] sm:$0xff]
    %v224 = vld [vmem:[%s209 + $0x70] sm:$0xff]
    %v225 = vld [vmem:[%s209 + $0x78] sm:$0xff]
    %226 = vmatpush.msra.mxu0 %v225
    %227 = vmatpush.msra.mxu0 %v224
    %228 = vmatpush.msra.mxu0 %v223
    %229 = vmatpush.msra.mxu0 %v222
    %230 = vmatpush.msra.mxu0 %v221
    %231 = vmatpush.msra.mxu0 %v220
    %232 = vmatpush.msra.mxu0 %v219
    %233 = vmatpush.msra.mxu0 %v218
    %234 = vmatpush.msra.mxu0 %v217
    %235 = vmatpush.msra.mxu0 %v216
    %236 = vmatpush.msra.mxu0 %v215
    %237 = vmatpush.msra.mxu0 %v214
    %238 = vmatpush.msra.mxu0 %v213
    %239 = vmatpush.msra.mxu0 %v212
    %240 = vmatpush.msra.mxu0 %v211
    %241 = vmatpush.msra.mxu0 %v210
    %242 = vmatmul.f32.gmra.mxu0 %v205
    %v243 = vpop.f32.mrf.mxu0
    %v244 = vadd.f32 0.0, %v243
    %245 = vmatmul.f32.gmra.mxu0 %v206
    %v246 = vpop.f32.mrf.mxu0
    %v247 = vadd.f32 0.0, %v246
    %248 = vmatmul.f32.gmra.mxu0 %v207
    %v249 = vpop.f32.mrf.mxu0
    %v250 = vadd.f32 0.0, %v249
    %251 = vmatmul.f32.gmra.mxu0 %v208
    %v252 = vpop.f32.mrf.mxu0
    %v253 = vadd.f32 0.0, %v252
    %254 = vdwg.mxu0
    %v255 = vadd.f32 %v199, %v244
    %v256 = vadd.f32 %v200, %v247
    %v257 = vadd.f32 %v201, %v250
    %v258 = vadd.f32 %v202, %v253
    %s259 = sadd.s32 %s44, 4
    %s260 = scalar_lea.vmem [#allocation2], %s259
    %v261 = vld [vmem:[%s260] sm:$0xff]
    %v262 = vld [vmem:[%s260 + $0x8] sm:$0xff]
    %v263 = vld [vmem:[%s260 + $0x10] sm:$0xff]
    %v264 = vld [vmem:[%s260 + $0x18] sm:$0xff]
    %s265 = scalar_lea.vmem [#allocation5], 512
    %v266 = vld [vmem:[%s265] sm:$0xff]
    %v267 = vld [vmem:[%s265 + $0x8] sm:$0xff]
    %v268 = vld [vmem:[%s265 + $0x10] sm:$0xff]
    %v269 = vld [vmem:[%s265 + $0x18] sm:$0xff]
    %v270 = vld [vmem:[%s265 + $0x20] sm:$0xff]
    %v271 = vld [vmem:[%s265 + $0x28] sm:$0xff]
    %v272 = vld [vmem:[%s265 + $0x30] sm:$0xff]
    %v273 = vld [vmem:[%s265 + $0x38] sm:$0xff]
    %v274 = vld [vmem:[%s265 + $0x40] sm:$0xff]
    %v275 = vld [vmem:[%s265 + $0x48] sm:$0xff]
    %v276 = vld [vmem:[%s265 + $0x50] sm:$0xff]
    %v277 = vld [vmem:[%s265 + $0x58] sm:$0xff]
    %v278 = vld [vmem:[%s265 + $0x60] sm:$0xff]
    %v279 = vld [vmem:[%s265 + $0x68] sm:$0xff]
    %v280 = vld [vmem:[%s265 + $0x70] sm:$0xff]
    %v281 = vld [vmem:[%s265 + $0x78] sm:$0xff]
    %282 = vmatpush.msra.mxu0 %v281
    %283 = vmatpush.msra.mxu0 %v280
    %284 = vmatpush.msra.mxu0 %v279
    %285 = vmatpush.msra.mxu0 %v278
    %286 = vmatpush.msra.mxu0 %v277
    %287 = vmatpush.msra.mxu0 %v276
    %288 = vmatpush.msra.mxu0 %v275
    %289 = vmatpush.msra.mxu0 %v274
    %290 = vmatpush.msra.mxu0 %v273
    %291 = vmatpush.msra.mxu0 %v272
    %292 = vmatpush.msra.mxu0 %v271
    %293 = vmatpush.msra.mxu0 %v270
    %294 = vmatpush.msra.mxu0 %v269
    %295 = vmatpush.msra.mxu0 %v268
    %296 = vmatpush.msra.mxu0 %v267
    %297 = vmatpush.msra.mxu0 %v266
    %298 = vmatmul.f32.gmra.mxu0 %v261
    %v299 = vpop.f32.mrf.mxu0
    %v300 = vadd.f32 0.0, %v299
    %301 = vmatmul.f32.gmra.mxu0 %v262
    %v302 = vpop.f32.mrf.mxu0
    %v303 = vadd.f32 0.0, %v302
    %304 = vmatmul.f32.gmra.mxu0 %v263
    %v305 = vpop.f32.mrf.mxu0
    %v306 = vadd.f32 0.0, %v305
    %307 = vmatmul.f32.gmra.mxu0 %v264
    %v308 = vpop.f32.mrf.mxu0
    %v309 = vadd.f32 0.0, %v308
    %310 = vdwg.mxu0
    %v311 = vadd.f32 %v255, %v300
    %v312 = vadd.f32 %v256, %v303
    %v313 = vadd.f32 %v257, %v306
    %v314 = vadd.f32 %v258, %v309
    %s315 = sadd.s32 %s44, 5
    %s316 = scalar_lea.vmem [#allocation2], %s315
    %v317 = vld [vmem:[%s316] sm:$0xff]
    %v318 = vld [vmem:[%s316 + $0x8] sm:$0xff]
    %v319 = vld [vmem:[%s316 + $0x10] sm:$0xff]
    %v320 = vld [vmem:[%s316 + $0x18] sm:$0xff]
    %s321 = scalar_lea.vmem [#allocation5], 640
    %v322 = vld [vmem:[%s321] sm:$0xff]
    %v323 = vld [vmem:[%s321 + $0x8] sm:$0xff]
    %v324 = vld [vmem:[%s321 + $0x10] sm:$0xff]
    %v325 = vld [vmem:[%s321 + $0x18] sm:$0xff]
    %v326 = vld [vmem:[%s321 + $0x20] sm:$0xff]
    %v327 = vld [vmem:[%s321 + $0x28] sm:$0xff]
    %v328 = vld [vmem:[%s321 + $0x30] sm:$0xff]
    %v329 = vld [vmem:[%s321 + $0x38] sm:$0xff]
    %v330 = vld [vmem:[%s321 + $0x40] sm:$0xff]
    %v331 = vld [vmem:[%s321 + $0x48] sm:$0xff]
    %v332 = vld [vmem:[%s321 + $0x50] sm:$0xff]
    %v333 = vld [vmem:[%s321 + $0x58] sm:$0xff]
    %v334 = vld [vmem:[%s321 + $0x60] sm:$0xff]
    %v335 = vld [vmem:[%s321 + $0x68] sm:$0xff]
    %v336 = vld [vmem:[%s321 + $0x70] sm:$0xff]
    %v337 = vld [vmem:[%s321 + $0x78] sm:$0xff]
    %338 = vmatpush.msra.mxu0 %v337
    %339 = vmatpush.msra.mxu0 %v336
    %340 = vmatpush.msra.mxu0 %v335
    %341 = vmatpush.msra.mxu0 %v334
    %342 = vmatpush.msra.mxu0 %v333
    %343 = vmatpush.msra.mxu0 %v332
    %344 = vmatpush.msra.mxu0 %v331
    %345 = vmatpush.msra.mxu0 %v330
    %346 = vmatpush.msra.mxu0 %v329
    %347 = vmatpush.msra.mxu0 %v328
    %348 = vmatpush.msra.mxu0 %v327
    %349 = vmatpush.msra.mxu0 %v326
    %350 = vmatpush.msra.mxu0 %v325
    %351 = vmatpush.msra.mxu0 %v324
    %352 = vmatpush.msra.mxu0 %v323
    %353 = vmatpush.msra.mxu0 %v322
    %354 = vmatmul.f32.gmra.mxu0 %v317
    %v355 = vpop.f32.mrf.mxu0
    %v356 = vadd.f32 0.0, %v355
    %357 = vmatmul.f32.gmra.mxu0 %v318
    %v358 = vpop.f32.mrf.mxu0
    %v359 = vadd.f32 0.0, %v358
    %360 = vmatmul.f32.gmra.mxu0 %v319
    %v361 = vpop.f32.mrf.mxu0
    %v362 = vadd.f32 0.0, %v361
    %363 = vmatmul.f32.gmra.mxu0 %v320
    %v364 = vpop.f32.mrf.mxu0
    %v365 = vadd.f32 0.0, %v364
    %366 = vdwg.mxu0
    %v367 = vadd.f32 %v311, %v356
    %v368 = vadd.f32 %v312, %v359
    %v369 = vadd.f32 %v313, %v362
    %v370 = vadd.f32 %v314, %v365
    %s371 = sadd.s32 %s44, 6
    %s372 = scalar_lea.vmem [#allocation2], %s371
    %v373 = vld [vmem:[%s372] sm:$0xff]
    %v374 = vld [vmem:[%s372 + $0x8] sm:$0xff]
    %v375 = vld [vmem:[%s372 + $0x10] sm:$0xff]
    %v376 = vld [vmem:[%s372 + $0x18] sm:$0xff]
    %s377 = scalar_lea.vmem [#allocation5], 768
    %v378 = vld [vmem:[%s377] sm:$0xff]
    %v379 = vld [vmem:[%s377 + $0x8] sm:$0xff]
    %v380 = vld [vmem:[%s377 + $0x10] sm:$0xff]
    %v381 = vld [vmem:[%s377 + $0x18] sm:$0xff]
    %v382 = vld [vmem:[%s377 + $0x20] sm:$0xff]
    %v383 = vld [vmem:[%s377 + $0x28] sm:$0xff]
    %v384 = vld [vmem:[%s377 + $0x30] sm:$0xff]
    %v385 = vld [vmem:[%s377 + $0x38] sm:$0xff]
    %v386 = vld [vmem:[%s377 + $0x40] sm:$0xff]
    %v387 = vld [vmem:[%s377 + $0x48] sm:$0xff]
    %v388 = vld [vmem:[%s377 + $0x50] sm:$0xff]
    %v389 = vld [vmem:[%s377 + $0x58] sm:$0xff]
    %v390 = vld [vmem:[%s377 + $0x60] sm:$0xff]
    %v391 = vld [vmem:[%s377 + $0x68] sm:$0xff]
    %v392 = vld [vmem:[%s377 + $0x70] sm:$0xff]
    %v393 = vld [vmem:[%s377 + $0x78] sm:$0xff]
    %394 = vmatpush.msra.mxu0 %v393
    %395 = vmatpush.msra.mxu0 %v392
    %396 = vmatpush.msra.mxu0 %v391
    %397 = vmatpush.msra.mxu0 %v390
    %398 = vmatpush.msra.mxu0 %v389
    %399 = vmatpush.msra.mxu0 %v388
    %400 = vmatpush.msra.mxu0 %v387
    %401 = vmatpush.msra.mxu0 %v386
    %402 = vmatpush.msra.mxu0 %v385
    %403 = vmatpush.msra.mxu0 %v384
    %404 = vmatpush.msra.mxu0 %v383
    %405 = vmatpush.msra.mxu0 %v382
    %406 = vmatpush.msra.mxu0 %v381
    %407 = vmatpush.msra.mxu0 %v380
    %408 = vmatpush.msra.mxu0 %v379
    %409 = vmatpush.msra.mxu0 %v378
    %410 = vmatmul.f32.gmra.mxu0 %v373
    %v411 = vpop.f32.mrf.mxu0
    %v412 = vadd.f32 0.0, %v411
    %413 = vmatmul.f32.gmra.mxu0 %v374
    %v414 = vpop.f32.mrf.mxu0
    %v415 = vadd.f32 0.0, %v414
    %416 = vmatmul.f32.gmra.mxu0 %v375
    %v417 = vpop.f32.mrf.mxu0
    %v418 = vadd.f32 0.0, %v417
    %419 = vmatmul.f32.gmra.mxu0 %v376
    %v420 = vpop.f32.mrf.mxu0
    %v421 = vadd.f32 0.0, %v420
    %422 = vdwg.mxu0
    %v423 = vadd.f32 %v367, %v412
    %v424 = vadd.f32 %v368, %v415
    %v425 = vadd.f32 %v369, %v418
    %v426 = vadd.f32 %v370, %v421
    %s427 = sadd.s32 %s44, 7
    %s428 = scalar_lea.vmem [#allocation2], %s427
    %v429 = vld [vmem:[%s428] sm:$0xff]
    %v430 = vld [vmem:[%s428 + $0x8] sm:$0xff]
    %v431 = vld [vmem:[%s428 + $0x10] sm:$0xff]
    %v432 = vld [vmem:[%s428 + $0x18] sm:$0xff]
    %s433 = scalar_lea.vmem [#allocation5], 896
    %v434 = vld [vmem:[%s433] sm:$0xff]
    %v435 = vld [vmem:[%s433 + $0x8] sm:$0xff]
    %v436 = vld [vmem:[%s433 + $0x10] sm:$0xff]
    %v437 = vld [vmem:[%s433 + $0x18] sm:$0xff]
    %v438 = vld [vmem:[%s433 + $0x20] sm:$0xff]
    %v439 = vld [vmem:[%s433 + $0x28] sm:$0xff]
    %v440 = vld [vmem:[%s433 + $0x30] sm:$0xff]
    %v441 = vld [vmem:[%s433 + $0x38] sm:$0xff]
    %v442 = vld [vmem:[%s433 + $0x40] sm:$0xff]
    %v443 = vld [vmem:[%s433 + $0x48] sm:$0xff]
    %v444 = vld [vmem:[%s433 + $0x50] sm:$0xff]
    %v445 = vld [vmem:[%s433 + $0x58] sm:$0xff]
    %v446 = vld [vmem:[%s433 + $0x60] sm:$0xff]
    %v447 = vld [vmem:[%s433 + $0x68] sm:$0xff]
    %v448 = vld [vmem:[%s433 + $0x70] sm:$0xff]
    %v449 = vld [vmem:[%s433 + $0x78] sm:$0xff]
    %450 = vmatpush.msra.mxu0 %v449
    %451 = vmatpush.msra.mxu0 %v448
    %452 = vmatpush.msra.mxu0 %v447
    %453 = vmatpush.msra.mxu0 %v446
    %454 = vmatpush.msra.mxu0 %v445
    %455 = vmatpush.msra.mxu0 %v444
    %456 = vmatpush.msra.mxu0 %v443
    %457 = vmatpush.msra.mxu0 %v442
    %458 = vmatpush.msra.mxu0 %v441
    %459 = vmatpush.msra.mxu0 %v440
    %460 = vmatpush.msra.mxu0 %v439
    %461 = vmatpush.msra.mxu0 %v438
    %462 = vmatpush.msra.mxu0 %v437
    %463 = vmatpush.msra.mxu0 %v436
    %464 = vmatpush.msra.mxu0 %v435
    %465 = vmatpush.msra.mxu0 %v434
    %466 = vmatmul.f32.gmra.mxu0 %v429
    %v467 = vpop.f32.mrf.mxu0
    %v468 = vadd.f32 0.0, %v467
    %469 = vmatmul.f32.gmra.mxu0 %v430
    %v470 = vpop.f32.mrf.mxu0
    %v471 = vadd.f32 0.0, %v470
    %472 = vmatmul.f32.gmra.mxu0 %v431
    %v473 = vpop.f32.mrf.mxu0
    %v474 = vadd.f32 0.0, %v473
    %475 = vmatmul.f32.gmra.mxu0 %v432
    %v476 = vpop.f32.mrf.mxu0
    %v477 = vadd.f32 0.0, %v476
    %478 = vdwg.mxu0
    %v479 = vadd.f32 %v423, %v468
    %v480 = vadd.f32 %v424, %v471
    %v481 = vadd.f32 %v425, %v474
    %v482 = vadd.f32 %v426, %v477
    %s483 = sadd.s32 %s44, 8
    %s484 = scalar_lea.vmem [#allocation2], %s483
    %v485 = vld [vmem:[%s484] sm:$0xff]
    %v486 = vld [vmem:[%s484 + $0x8] sm:$0xff]
    %v487 = vld [vmem:[%s484 + $0x10] sm:$0xff]
    %v488 = vld [vmem:[%s484 + $0x18] sm:$0xff]
    %s489 = scalar_lea.vmem [#allocation5], 1024
    %v490 = vld [vmem:[%s489] sm:$0xff]
    %v491 = vld [vmem:[%s489 + $0x8] sm:$0xff]
    %v492 = vld [vmem:[%s489 + $0x10] sm:$0xff]
    %v493 = vld [vmem:[%s489 + $0x18] sm:$0xff]
    %v494 = vld [vmem:[%s489 + $0x20] sm:$0xff]
    %v495 = vld [vmem:[%s489 + $0x28] sm:$0xff]
    %v496 = vld [vmem:[%s489 + $0x30] sm:$0xff]
    %v497 = vld [vmem:[%s489 + $0x38] sm:$0xff]
    %v498 = vld [vmem:[%s489 + $0x40] sm:$0xff]
    %v499 = vld [vmem:[%s489 + $0x48] sm:$0xff]
    %v500 = vld [vmem:[%s489 + $0x50] sm:$0xff]
    %v501 = vld [vmem:[%s489 + $0x58] sm:$0xff]
    %v502 = vld [vmem:[%s489 + $0x60] sm:$0xff]
    %v503 = vld [vmem:[%s489 + $0x68] sm:$0xff]
    %v504 = vld [vmem:[%s489 + $0x70] sm:$0xff]
    %v505 = vld [vmem:[%s489 + $0x78] sm:$0xff]
    %506 = vmatpush.msra.mxu0 %v505
    %507 = vmatpush.msra.mxu0 %v504
    %508 = vmatpush.msra.mxu0 %v503
    %509 = vmatpush.msra.mxu0 %v502
    %510 = vmatpush.msra.mxu0 %v501
    %511 = vmatpush.msra.mxu0 %v500
    %512 = vmatpush.msra.mxu0 %v499
    %513 = vmatpush.msra.mxu0 %v498
    %514 = vmatpush.msra.mxu0 %v497
    %515 = vmatpush.msra.mxu0 %v496
    %516 = vmatpush.msra.mxu0 %v495
    %517 = vmatpush.msra.mxu0 %v494
    %518 = vmatpush.msra.mxu0 %v493
    %519 = vmatpush.msra.mxu0 %v492
    %520 = vmatpush.msra.mxu0 %v491
    %521 = vmatpush.msra.mxu0 %v490
    %522 = vmatmul.f32.gmra.mxu0 %v485
    %v523 = vpop.f32.mrf.mxu0
    %v524 = vadd.f32 0.0, %v523
    %525 = vmatmul.f32.gmra.mxu0 %v486
    %v526 = vpop.f32.mrf.mxu0
    %v527 = vadd.f32 0.0, %v526
    %528 = vmatmul.f32.gmra.mxu0 %v487
    %v529 = vpop.f32.mrf.mxu0
    %v530 = vadd.f32 0.0, %v529
    %531 = vmatmul.f32.gmra.mxu0 %v488
    %v532 = vpop.f32.mrf.mxu0
    %v533 = vadd.f32 0.0, %v532
    %534 = vdwg.mxu0
    %v535 = vadd.f32 %v479, %v524
    %v536 = vadd.f32 %v480, %v527
    %v537 = vadd.f32 %v481, %v530
    %v538 = vadd.f32 %v482, %v533
    %s539 = sadd.s32 %s44, 9
    %s540 = scalar_lea.vmem [#allocation2], %s539
    %v541 = vld [vmem:[%s540] sm:$0xff]
    %v542 = vld [vmem:[%s540 + $0x8] sm:$0xff]
    %v543 = vld [vmem:[%s540 + $0x10] sm:$0xff]
    %v544 = vld [vmem:[%s540 + $0x18] sm:$0xff]
    %s545 = scalar_lea.vmem [#allocation5], 1152
    %v546 = vld [vmem:[%s545] sm:$0xff]
    %v547 = vld [vmem:[%s545 + $0x8] sm:$0xff]
    %v548 = vld [vmem:[%s545 + $0x10] sm:$0xff]
    %v549 = vld [vmem:[%s545 + $0x18] sm:$0xff]
    %v550 = vld [vmem:[%s545 + $0x20] sm:$0xff]
    %v551 = vld [vmem:[%s545 + $0x28] sm:$0xff]
    %v552 = vld [vmem:[%s545 + $0x30] sm:$0xff]
    %v553 = vld [vmem:[%s545 + $0x38] sm:$0xff]
    %v554 = vld [vmem:[%s545 + $0x40] sm:$0xff]
    %v555 = vld [vmem:[%s545 + $0x48] sm:$0xff]
    %v556 = vld [vmem:[%s545 + $0x50] sm:$0xff]
    %v557 = vld [vmem:[%s545 + $0x58] sm:$0xff]
    %v558 = vld [vmem:[%s545 + $0x60] sm:$0xff]
    %v559 = vld [vmem:[%s545 + $0x68] sm:$0xff]
    %v560 = vld [vmem:[%s545 + $0x70] sm:$0xff]
    %v561 = vld [vmem:[%s545 + $0x78] sm:$0xff]
    %562 = vmatpush.msra.mxu0 %v561
    %563 = vmatpush.msra.mxu0 %v560
    %564 = vmatpush.msra.mxu0 %v559
    %565 = vmatpush.msra.mxu0 %v558
    %566 = vmatpush.msra.mxu0 %v557
    %567 = vmatpush.msra.mxu0 %v556
    %568 = vmatpush.msra.mxu0 %v555
    %569 = vmatpush.msra.mxu0 %v554
    %570 = vmatpush.msra.mxu0 %v553
    %571 = vmatpush.msra.mxu0 %v552
    %572 = vmatpush.msra.mxu0 %v551
    %573 = vmatpush.msra.mxu0 %v550
    %574 = vmatpush.msra.mxu0 %v549
    %575 = vmatpush.msra.mxu0 %v548
    %576 = vmatpush.msra.mxu0 %v547
    %577 = vmatpush.msra.mxu0 %v546
    %578 = vmatmul.f32.gmra.mxu0 %v541
    %v579 = vpop.f32.mrf.mxu0
    %v580 = vadd.f32 0.0, %v579
    %581 = vmatmul.f32.gmra.mxu0 %v542
    %v582 = vpop.f32.mrf.mxu0
    %v583 = vadd.f32 0.0, %v582
    %584 = vmatmul.f32.gmra.mxu0 %v543
    %v585 = vpop.f32.mrf.mxu0
    %v586 = vadd.f32 0.0, %v585
    %587 = vmatmul.f32.gmra.mxu0 %v544
    %v588 = vpop.f32.mrf.mxu0
    %v589 = vadd.f32 0.0, %v588
    %590 = vdwg.mxu0
    %v591 = vadd.f32 %v535, %v580
    %v592 = vadd.f32 %v536, %v583
    %v593 = vadd.f32 %v537, %v586
    %v594 = vadd.f32 %v538, %v589
    %s595 = sadd.s32 %s44, 10
    %s596 = scalar_lea.vmem [#allocation2], %s595
    %v597 = vld [vmem:[%s596] sm:$0xff]
    %v598 = vld [vmem:[%s596 + $0x8] sm:$0xff]
    %v599 = vld [vmem:[%s596 + $0x10] sm:$0xff]
    %v600 = vld [vmem:[%s596 + $0x18] sm:$0xff]
    %s601 = scalar_lea.vmem [#allocation5], 1280
    %v602 = vld [vmem:[%s601] sm:$0xff]
    %v603 = vld [vmem:[%s601 + $0x8] sm:$0xff]
    %v604 = vld [vmem:[%s601 + $0x10] sm:$0xff]
    %v605 = vld [vmem:[%s601 + $0x18] sm:$0xff]
    %v606 = vld [vmem:[%s601 + $0x20] sm:$0xff]
    %v607 = vld [vmem:[%s601 + $0x28] sm:$0xff]
    %v608 = vld [vmem:[%s601 + $0x30] sm:$0xff]
    %v609 = vld [vmem:[%s601 + $0x38] sm:$0xff]
    %v610 = vld [vmem:[%s601 + $0x40] sm:$0xff]
    %v611 = vld [vmem:[%s601 + $0x48] sm:$0xff]
    %v612 = vld [vmem:[%s601 + $0x50] sm:$0xff]
    %v613 = vld [vmem:[%s601 + $0x58] sm:$0xff]
    %v614 = vld [vmem:[%s601 + $0x60] sm:$0xff]
    %v615 = vld [vmem:[%s601 + $0x68] sm:$0xff]
    %v616 = vld [vmem:[%s601 + $0x70] sm:$0xff]
    %v617 = vld [vmem:[%s601 + $0x78] sm:$0xff]
    %618 = vmatpush.msra.mxu0 %v617
    %619 = vmatpush.msra.mxu0 %v616
    %620 = vmatpush.msra.mxu0 %v615
    %621 = vmatpush.msra.mxu0 %v614
    %622 = vmatpush.msra.mxu0 %v613
    %623 = vmatpush.msra.mxu0 %v612
    %624 = vmatpush.msra.mxu0 %v611
    %625 = vmatpush.msra.mxu0 %v610
    %626 = vmatpush.msra.mxu0 %v609
    %627 = vmatpush.msra.mxu0 %v608
    %628 = vmatpush.msra.mxu0 %v607
    %629 = vmatpush.msra.mxu0 %v606
    %630 = vmatpush.msra.mxu0 %v605
    %631 = vmatpush.msra.mxu0 %v604
    %632 = vmatpush.msra.mxu0 %v603
    %633 = vmatpush.msra.mxu0 %v602
    %634 = vmatmul.f32.gmra.mxu0 %v597
    %v635 = vpop.f32.mrf.mxu0
    %v636 = vadd.f32 0.0, %v635
    %637 = vmatmul.f32.gmra.mxu0 %v598
    %v638 = vpop.f32.mrf.mxu0
    %v639 = vadd.f32 0.0, %v638
    %640 = vmatmul.f32.gmra.mxu0 %v599
    %v641 = vpop.f32.mrf.mxu0
    %v642 = vadd.f32 0.0, %v641
    %643 = vmatmul.f32.gmra.mxu0 %v600
    %v644 = vpop.f32.mrf.mxu0
    %v645 = vadd.f32 0.0, %v644
    %646 = vdwg.mxu0
    %v647 = vadd.f32 %v591, %v636
    %v648 = vadd.f32 %v592, %v639
    %v649 = vadd.f32 %v593, %v642
    %v650 = vadd.f32 %v594, %v645
    %s651 = sadd.s32 %s44, 11
    %s652 = scalar_lea.vmem [#allocation2], %s651
    %v653 = vld [vmem:[%s652] sm:$0xff]
    %v654 = vld [vmem:[%s652 + $0x8] sm:$0xff]
    %v655 = vld [vmem:[%s652 + $0x10] sm:$0xff]
    %v656 = vld [vmem:[%s652 + $0x18] sm:$0xff]
    %s657 = scalar_lea.vmem [#allocation5], 1408
    %v658 = vld [vmem:[%s657] sm:$0xff]
    %v659 = vld [vmem:[%s657 + $0x8] sm:$0xff]
    %v660 = vld [vmem:[%s657 + $0x10] sm:$0xff]
    %v661 = vld [vmem:[%s657 + $0x18] sm:$0xff]
    %v662 = vld [vmem:[%s657 + $0x20] sm:$0xff]
    %v663 = vld [vmem:[%s657 + $0x28] sm:$0xff]
    %v664 = vld [vmem:[%s657 + $0x30] sm:$0xff]
    %v665 = vld [vmem:[%s657 + $0x38] sm:$0xff]
    %v666 = vld [vmem:[%s657 + $0x40] sm:$0xff]
    %v667 = vld [vmem:[%s657 + $0x48] sm:$0xff]
    %v668 = vld [vmem:[%s657 + $0x50] sm:$0xff]
    %v669 = vld [vmem:[%s657 + $0x58] sm:$0xff]
    %v670 = vld [vmem:[%s657 + $0x60] sm:$0xff]
    %v671 = vld [vmem:[%s657 + $0x68] sm:$0xff]
    %v672 = vld [vmem:[%s657 + $0x70] sm:$0xff]
    %v673 = vld [vmem:[%s657 + $0x78] sm:$0xff]
    %674 = vmatpush.msra.mxu0 %v673
    %675 = vmatpush.msra.mxu0 %v672
    %676 = vmatpush.msra.mxu0 %v671
    %677 = vmatpush.msra.mxu0 %v670
    %678 = vmatpush.msra.mxu0 %v669
    %679 = vmatpush.msra.mxu0 %v668
    %680 = vmatpush.msra.mxu0 %v667
    %681 = vmatpush.msra.mxu0 %v666
    %682 = vmatpush.msra.mxu0 %v665
    %683 = vmatpush.msra.mxu0 %v664
    %684 = vmatpush.msra.mxu0 %v663
    %685 = vmatpush.msra.mxu0 %v662
    %686 = vmatpush.msra.mxu0 %v661
    %687 = vmatpush.msra.mxu0 %v660
    %688 = vmatpush.msra.mxu0 %v659
    %689 = vmatpush.msra.mxu0 %v658
    %690 = vmatmul.f32.gmra.mxu0 %v653
    %v691 = vpop.f32.mrf.mxu0
    %v692 = vadd.f32 0.0, %v691
    %693 = vmatmul.f32.gmra.mxu0 %v654
    %v694 = vpop.f32.mrf.mxu0
    %v695 = vadd.f32 0.0, %v694
    %696 = vmatmul.f32.gmra.mxu0 %v655
    %v697 = vpop.f32.mrf.mxu0
    %v698 = vadd.f32 0.0, %v697
    %699 = vmatmul.f32.gmra.mxu0 %v656
    %v700 = vpop.f32.mrf.mxu0
    %v701 = vadd.f32 0.0, %v700
    %702 = vdwg.mxu0
    %v703 = vadd.f32 %v647, %v692
    %v704 = vadd.f32 %v648, %v695
    %v705 = vadd.f32 %v649, %v698
    %v706 = vadd.f32 %v650, %v701
    %s707 = sadd.s32 %s44, 12
    %s708 = scalar_lea.vmem [#allocation2], %s707
    %v709 = vld [vmem:[%s708] sm:$0xff]
    %v710 = vld [vmem:[%s708 + $0x8] sm:$0xff]
    %v711 = vld [vmem:[%s708 + $0x10] sm:$0xff]
    %v712 = vld [vmem:[%s708 + $0x18] sm:$0xff]
    %s713 = scalar_lea.vmem [#allocation5], 1536
    %v714 = vld [vmem:[%s713] sm:$0xff]
    %v715 = vld [vmem:[%s713 + $0x8] sm:$0xff]
    %v716 = vld [vmem:[%s713 + $0x10] sm:$0xff]
    %v717 = vld [vmem:[%s713 + $0x18] sm:$0xff]
    %v718 = vld [vmem:[%s713 + $0x20] sm:$0xff]
    %v719 = vld [vmem:[%s713 + $0x28] sm:$0xff]
    %v720 = vld [vmem:[%s713 + $0x30] sm:$0xff]
    %v721 = vld [vmem:[%s713 + $0x38] sm:$0xff]
    %v722 = vld [vmem:[%s713 + $0x40] sm:$0xff]
    %v723 = vld [vmem:[%s713 + $0x48] sm:$0xff]
    %v724 = vld [vmem:[%s713 + $0x50] sm:$0xff]
    %v725 = vld [vmem:[%s713 + $0x58] sm:$0xff]
    %v726 = vld [vmem:[%s713 + $0x60] sm:$0xff]
    %v727 = vld [vmem:[%s713 + $0x68] sm:$0xff]
    %v728 = vld [vmem:[%s713 + $0x70] sm:$0xff]
    %v729 = vld [vmem:[%s713 + $0x78] sm:$0xff]
    %730 = vmatpush.msra.mxu0 %v729
    %731 = vmatpush.msra.mxu0 %v728
    %732 = vmatpush.msra.mxu0 %v727
    %733 = vmatpush.msra.mxu0 %v726
    %734 = vmatpush.msra.mxu0 %v725
    %735 = vmatpush.msra.mxu0 %v724
    %736 = vmatpush.msra.mxu0 %v723
    %737 = vmatpush.msra.mxu0 %v722
    %738 = vmatpush.msra.mxu0 %v721
    %739 = vmatpush.msra.mxu0 %v720
    %740 = vmatpush.msra.mxu0 %v719
    %741 = vmatpush.msra.mxu0 %v718
    %742 = vmatpush.msra.mxu0 %v717
    %743 = vmatpush.msra.mxu0 %v716
    %744 = vmatpush.msra.mxu0 %v715
    %745 = vmatpush.msra.mxu0 %v714
    %746 = vmatmul.f32.gmra.mxu0 %v709
    %v747 = vpop.f32.mrf.mxu0
    %v748 = vadd.f32 0.0, %v747
    %749 = vmatmul.f32.gmra.mxu0 %v710
    %v750 = vpop.f32.mrf.mxu0
    %v751 = vadd.f32 0.0, %v750
    %752 = vmatmul.f32.gmra.mxu0 %v711
    %v753 = vpop.f32.mrf.mxu0
    %v754 = vadd.f32 0.0, %v753
    %755 = vmatmul.f32.gmra.mxu0 %v712
    %v756 = vpop.f32.mrf.mxu0
    %v757 = vadd.f32 0.0, %v756
    %758 = vdwg.mxu0
    %v759 = vadd.f32 %v703, %v748
    %v760 = vadd.f32 %v704, %v751
    %v761 = vadd.f32 %v705, %v754
    %v762 = vadd.f32 %v706, %v757
    %763 = vst [vmem:[#allocation7] sm:$0xff] %v759
    %764 = vst [vmem:[#allocation7 + $0x8] sm:$0xff] %v760
    %765 = vst [vmem:[#allocation7 + $0x10] sm:$0xff] %v761
    %766 = vst [vmem:[#allocation7 + $0x18] sm:$0xff] %v762
    // Predicated region
    $region18: #{tpu_custom_call.1} parent=1 // pred_check
      _
    $region19: #{tpu_custom_call.1} parent=1 // pred_check_branch
      %768 = sbr.rel (0) target = $region21
    $region20: #{tpu_custom_call.1} parent=1 // pred_region
      %770 = vsyncadd [#allocation4], 0
      %s771 = sshll.u32 [#allocation7], 4
      %s772 = int_to_ptr.vmem [resolvable:$true] %s771
      %s773 = sshll.u32 %s2, 4
      %s774 = int_to_ptr.hbm [resolvable:$true] %s773
      %779 = dma.vmem_to_hbm [thread:$0]  %s772, 512, %s774, [#allocation4], 128, 128, 8
    $region21: #{tpu_custom_call.1} parent=1 // pred_fallthru
      _
    // Predicated region
    $region22: #{tpu_custom_call.1} parent=1 // pred_check
      _
    $region23: #{tpu_custom_call.1} parent=1 // pred_check_branch
      %781 = sbr.rel (0) target = $region25
    $region24: #{tpu_custom_call.1} parent=1 // pred_region
      %783 = dma.done [#allocation4], 512
    $region25: #{tpu_custom_call.1} parent=1 // pred_fallthru
      _
    %784 = vsyncpa [#allocation3], 1
    %785 = vsyncpa [#allocation6], 1
    %786 = vsyncpa [#allocation4], 1

</llo_original>
